<compile_context>
chip_gen: v5e
topology: v5e:2x2
jax: 0.10.0
libtpu: 0.0.40
codegen_flags: <defaults>
</compile_context>

<pallas_src>
import functools

import jax
import jax.numpy as jnp
from jax.experimental import pallas as pl
from jax.experimental.pallas import tpu as pltpu


# --------------------------------------------------------------------------------------
# Pallas kernels (lane-dense layout: channels on sublanes, M = N*H*W on lanes)
# --------------------------------------------------------------------------------------

def _mask_and_stats(y, y_ref, s_ref, q_ref, *, need_mask, m_real, tm):
    """Zero padded tail columns (static trace-time switch), store y + per-block stats."""
    if need_mask:  # only generated when M was padded (trace-time decision)
        col = jax.lax.broadcasted_iota(jnp.int32, y.shape, 1) + pl.program_id(0) * tm
        y = jnp.where(col < m_real, y, 0.0)
    y_ref[...] = y
    s_ref[...] = jnp.sum(y, axis=1, keepdims=True)[None]        # (1, Cout, 1) partial sum
    q_ref[...] = jnp.sum(y * y, axis=1, keepdims=True)[None]    # (1, Cout, 1) partial sumsq


def _gemm_stats_kernel(w_ref, a_ref, y_ref, s_ref, q_ref, *, need_mask, m_real, tm):
    """y (Cout, TM) = W (Cout, K) @ a (K, TM) on the MXU, plus per-block BN statistics."""
    y = jnp.dot(w_ref[...], a_ref[...], preferred_element_type=jnp.float32)
    _mask_and_stats(y, y_ref, s_ref, q_ref, need_mask=need_mask, m_real=m_real, tm=tm)


def _bnrelu_gemm_stats_kernel(w_ref, a_ref, sc_ref, sh_ref, y_ref, s_ref, q_ref,
                              *, need_mask, m_real, tm):
    """Fused: previous layer's BN-affine + ReLU (f32, VPU) on the input rows, then bf16 GEMM."""
    a = jnp.maximum(a_ref[...] * sc_ref[...] + sh_ref[...], 0.0)
    y = jnp.dot(w_ref[...], a.astype(jnp.bfloat16), preferred_element_type=jnp.float32)
    _mask_and_stats(y, y_ref, s_ref, q_ref, need_mask=need_mask, m_real=m_real, tm=tm)


def _bn_add_relu_kernel(y_ref, sc_ref, sh_ref, r_ref, o_ref):
    """Final BN-affine + identity-shortcut add + output ReLU (all f32, lane-dense)."""
    o_ref[...] = jnp.maximum(y_ref[...] * sc_ref[...] + sh_ref[...] + r_ref[...], 0.0)


# --------------------------------------------------------------------------------------
# Pallas wrappers
# --------------------------------------------------------------------------------------

def _round_up(x, n):
    return -(-x // n) * n


def _pick_tm(m_pad):
    """Largest lane tile (multiple of 128) dividing padded M; KB-scale => fits any VMEM."""
    for t in (2048, 1024, 512, 256, 128):
        if m_pad % t == 0:
            return t
    return m_pad


def _pad_lanes(a, m_pad):
    m = a.shape[-1]
    if m == m_pad:
        return a
    return jnp.pad(a, [(0, 0)] * (a.ndim - 1) + [(0, m_pad - m)])


def gemm_stats(w, a, m_real, scale=None, shift=None):
    """Transposed conv-as-GEMM: w (Cout, K) bf16, a (K, Mpad).
    Optionally fuses the previous layer's BN(scale,shift)+ReLU onto the rows of `a` (f32).
    Returns raw pre-BN y (Cout, Mpad) f32 and per-channel (sum, sum_sq), each (Cout, 1)."""
    cout, kdim = w.shape
    m_pad = a.shape[-1]
    tm = _pick_tm(m_pad)
    g = m_pad // tm
    need_mask = (m_pad != m_real)

    w_spec = pl.BlockSpec((cout, kdim), lambda i: (0, 0))      # resident across the grid
    a_spec = pl.BlockSpec((kdim, tm), lambda i: (0, i))        # streamed over M

    if scale is None:
        kernel = functools.partial(_gemm_stats_kernel,
                                   need_mask=need_mask, m_real=m_real, tm=tm)
        in_specs = [w_spec, a_spec]
        args = (w, a)
    else:
        kernel = functools.partial(_bnrelu_gemm_stats_kernel,
                                   need_mask=need_mask, m_real=m_real, tm=tm)
        in_specs = [w_spec, a_spec,
                    pl.BlockSpec((kdim, 1), lambda i: (0, 0)),
                    pl.BlockSpec((kdim, 1), lambda i: (0, 0))]
        args = (w, a, scale.reshape(kdim, 1).astype(jnp.float32),
                shift.reshape(kdim, 1).astype(jnp.float32))

    y, s, q = pl.pallas_call(
        kernel,
        out_shape=(jax.ShapeDtypeStruct((cout, m_pad), jnp.float32),
                   jax.ShapeDtypeStruct((g, cout, 1), jnp.float32),
                   jax.ShapeDtypeStruct((g, cout, 1), jnp.float32)),
        grid_spec=pltpu.PrefetchScalarGridSpec(
            num_scalar_prefetch=0,
            grid=(g,),
            in_specs=in_specs,
            out_specs=[pl.BlockSpec((cout, tm), lambda i: (0, i)),
                       pl.BlockSpec((1, cout, 1), lambda i: (i, 0, 0)),
                       pl.BlockSpec((1, cout, 1), lambda i: (i, 0, 0))]),
        compiler_params=pltpu.CompilerParams(dimension_semantics=("parallel",)),
    )(*args)
    return y, jnp.sum(s, axis=0), jnp.sum(q, axis=0)


def bn_add_relu(y, scale, shift, residual):
    """out = ReLU(y * scale + shift + residual); all (C, Mpad) f32, lane-dense."""
    c, m_pad = y.shape
    tm = _pick_tm(m_pad)
    return pl.pallas_call(
        _bn_add_relu_kernel,
        out_shape=jax.ShapeDtypeStruct((c, m_pad), jnp.float32),
        grid_spec=pltpu.PrefetchScalarGridSpec(
            num_scalar_prefetch=0,
            grid=(m_pad // tm,),
            in_specs=[pl.BlockSpec((c, tm), lambda i: (0, i)),
                      pl.BlockSpec((c, 1), lambda i: (0, 0)),
                      pl.BlockSpec((c, 1), lambda i: (0, 0)),
                      pl.BlockSpec((c, tm), lambda i: (0, i))],
            out_specs=pl.BlockSpec((c, tm), lambda i: (0, i))),
        compiler_params=pltpu.CompilerParams(dimension_semantics=("parallel",)),
    )(y, scale.reshape(c, 1).astype(jnp.float32),
      shift.reshape(c, 1).astype(jnp.float32), residual)


# --------------------------------------------------------------------------------------
# JAX glue: DHP hyper-network, BN folding, im2col, bottleneck forward
# --------------------------------------------------------------------------------------

def calc_weight(p, z_in, k):
    """DHP hyper-network: latent vectors -> conv weight [O, I, k, k]."""
    z_out = p["latent_vector"]
    lm = z_out[:, None] * z_in[None, :]                                  # [O, I]
    emb = p["hyper_w1"] * lm[..., None] + p["hyper_b1"]                  # [O, I, m]
    w = jnp.einsum("oikm,oim->oik", p["hyper_w2"], emb) + p["hyper_b2"]  # [O, I, k*k]
    o, i = lm.shape
    return w.reshape(o, i, k, k)


def _bn_affine(s, q, m_real, gamma, beta, eps=1e-5):
    """Train-mode BatchNorm2d folded to per-channel scale/shift from batch statistics."""
    mean = s[:, 0] / m_real
    var = q[:, 0] / m_real - mean * mean          # biased variance (matches PyTorch norm)
    # TODO(synk): E[y^2]-E[y]^2 in f32 can cancel for large-mean activations; a fused
    #             two-pass / Welford-style reduction would be more robust.
    inv_std = jax.lax.rsqrt(var + eps)
    scale = gamma * inv_std
    shift = beta - mean * scale
    return scale, shift


def _im2col_T(a, k, stride, pad):
    """a: (C, N, H, W) post-activation -> bf16 patches (C*k*k, N*Ho*Wo); row order
    (c, dy, dx) matches weight.reshape(Cout, C*k*k).  Under jit, the previous layer's
    BN+ReLU fuses into this pad/slice/stack, so no standalone HBM pass for the affine."""
    c, n, h, w = a.shape
    ap = jnp.pad(a, ((0, 0), (0, 0), (pad, pad), (pad, pad)))
    ho = (h + 2 * pad - k) // stride + 1
    wo = (w + 2 * pad - k) // stride + 1
    taps = []
    for dy in range(k):
        for dx in range(k):
            taps.append(ap[:, :, dy:dy + (ho - 1) * stride + 1:stride,
                               dx:dx + (wo - 1) * stride + 1:stride])
    patches = jnp.stack(taps, axis=1)                    # (C, k*k, N, Ho, Wo)
    return patches.reshape(c * k * k, n * ho * wo).astype(jnp.bfloat16), ho, wo


@functools.partial(jax.jit, static_argnames=("stride", "k1", "k2", "k3"))
def bottleneck_dhp_forward(x_nchw, latent_input_vector, params, *,
                           stride=1, k1=1, k2=3, k3=1, eps=1e-5):
    """Forward of BottleNeck_dhp (not finetuning): x (NCHW), latent_input_vector (Cin,)."""
    n, cin, h, w = x_nchw.shape
    p1, p2, p3 = params["layer1"], params["layer2"], params["layer3"]
    c1 = p1["latent_vector"].shape[0]
    c2 = p2["latent_vector"].shape[0]
    c3 = p3["latent_vector"].shape[0]

    # Channel-major "transposed" slab: (C, M) with M = N*H*W on the 128-lane axis.
    m1 = n * h * w
    m1p = _round_up(m1, 128)
    xT = _pad_lanes(x_nchw.astype(jnp.float32).transpose(1, 0, 2, 3).reshape(cin, m1), m1p)

    # ---- layer1: 1x1 conv == channel GEMM, with in-kernel batch stats ----
    w1 = calc_weight(p1, latent_input_vector, k1).reshape(c1, cin).astype(jnp.bfloat16)
    y1, s1, q1 = gemm_stats(w1, xT.astype(jnp.bfloat16), m1)
    scale1, shift1 = _bn_affine(s1, q1, m1, p1["bn_gamma"], p1["bn_beta"], eps)

    # ---- layer2: kxk conv (stride) ----
    # BN1+ReLU must be applied *before* zero padding, so it rides the XLA fusion that
    # builds the bf16 im2col patches (no standalone Pallas BN pass).
    # TODO(synk): replace the HBM im2col with in-kernel shifted-matmul taps to drop the
    #             k*k expansion entirely.
    a1 = jnp.maximum(y1[:, :m1] * scale1[:, None] + shift1[:, None], 0.0)
    patches, ho, wo = _im2col_T(a1.reshape(c1, n, h, w), k2, stride, k2 // 2)
    m2 = n * ho * wo
    m2p = _round_up(m2, 128)
    w2 = calc_weight(p2, p1["latent_vector"], k2).reshape(c2, c1 * k2 * k2).astype(jnp.bfloat16)
    y2, s2, q2 = gemm_stats(w2, _pad_lanes(patches, m2p), m2)
    scale2, shift2 = _bn_affine(s2, q2, m2, p2["bn_gamma"], p2["bn_beta"], eps)

    # ---- layer3: 1x1 conv with layer2's BN+ReLU fused in as a kernel pre-op ----
    w3 = calc_weight(p3, p2["latent_vector"], k3).reshape(c3, c2).astype(jnp.bfloat16)
    y3, s3, q3 = gemm_stats(w3, y2, m2, scale=scale2, shift=shift2)
    scale3, shift3 = _bn_affine(s3, q3, m2, p3["bn_gamma"], p3["bn_beta"], eps)

    # ---- BN3 + identity shortcut + output activation ----
    # TODO(synk): optional `downsample` conv_dhp branch not instantiated.
    assert stride == 1 and cin == c3, "identity shortcut needs stride=1 and in_ch == 4*planes"
    outT = bn_add_relu(y3, scale3, shift3, xT)
    out = outT[:, :m2].reshape(c3, n, ho, wo).transpose(1, 0, 2, 3)    # -> NCHW
    return out


def init_conv_dhp(key, in_ch, out_ch, k, embedding_dim=8, latent_vector=None):
    ks = jax.random.split(key, 5)
    if latent_vector is None:
        latent_vector = jax.random.normal(ks[0], (out_ch,), jnp.float32)
    return dict(
        latent_vector=latent_vector,
        hyper_w1=jax.random.normal(ks[1], (out_ch, in_ch, embedding_dim), jnp.float32) / embedding_dim,
        hyper_b1=jax.random.normal(ks[2], (out_ch, in_ch, embedding_dim), jnp.float32) * 0.1,
        hyper_w2=jax.random.normal(ks[3], (out_ch, in_ch, k * k, embedding_dim), jnp.float32)
                 / (k * embedding_dim),
        hyper_b2=jax.random.normal(ks[4], (out_ch, in_ch, k * k), jnp.float32) * 0.01,
        bn_gamma=jnp.ones((out_ch,), jnp.float32),   # PyTorch BatchNorm2d default init
        bn_beta=jnp.zeros((out_ch,), jnp.float32),
    )


# --------------------------------------------------------------------------------------

if __name__ == "__main__":
    key = jax.random.PRNGKey(0)
    in_channels, planes, kernel_size, stride = 16, 4, 3, 1
    expansion = 4
    N, H, W = 2, 16, 16

    k_x, k_lat, k_shared, kk1, kk2, kk3 = jax.random.split(key, 6)
    x = jax.random.normal(k_x, (N, in_channels, H, W), jnp.float32)                  # NCHW
    latent_input_vector = jax.random.normal(k_lat, (in_channels,), jnp.float32)
    shared_latent = jax.random.normal(k_shared, (expansion * planes,), jnp.float32)  # shared z

    params = dict(
        layer1=init_conv_dhp(kk1, in_channels, planes, 1),
        layer2=init_conv_dhp(kk2, planes, planes, kernel_size),
        layer3=init_conv_dhp(kk3, planes, expansion * planes, 1, latent_vector=shared_latent),
    )

    out = bottleneck_dhp_forward(x, latent_input_vector, params,
                                 stride=stride, k1=1, k2=kernel_size, k3=1)
    out = jax.block_until_ready(out)
    assert out.shape == (N, expansion * planes, H // stride, W // stride), out.shape
    assert bool(jnp.all(jnp.isfinite(out)))
    print("KERNEL_OK")
</pallas_src>

<mosaic_0001>
module attributes {stable_mosaic.version = 11 : i64} {
  func.func @_gemm_stats_kernel(%arg0: i32, %arg1: memref<4x16xbf16, #tpu.memory_space<vmem>>, %arg2: memref<16x512xbf16, #tpu.memory_space<vmem>>, %arg3: memref<4x512xf32, #tpu.memory_space<vmem>>, %arg4: memref<1x4x1xf32, #tpu.memory_space<vmem>>, %arg5: memref<1x4x1xf32, #tpu.memory_space<vmem>>) attributes {dimension_semantics = [#tpu.dimension_semantics<parallel>], iteration_bounds = array<i64: 1>, scalar_prefetch = 0 : i64, scratch_operands = 0 : i64, tpu.core_type = #tpu.core_type<tc>, window_params = [{pipeline_mode = #tpu.pipeline_mode<synchronous>, transform_indices = @transform_0, window_bounds = array<i64: 4, 16>}, {transform_indices = @transform_1, window_bounds = array<i64: 16, 512>}, {transform_indices = @transform_2, window_bounds = array<i64: 4, 512>}, {transform_indices = @transform_3, window_bounds = array<i64: 1, 4, 1>}, {transform_indices = @transform_4, window_bounds = array<i64: 1, 4, 1>}]} {
    %c0 = arith.constant 0 : index
    %c0_0 = arith.constant 0 : index
    %0 = vector.load %arg1[%c0, %c0_0] : memref<4x16xbf16, #tpu.memory_space<vmem>>, vector<4x16xbf16>
    %c0_1 = arith.constant 0 : index
    %c0_2 = arith.constant 0 : index
    %1 = vector.load %arg2[%c0_1, %c0_2] : memref<16x512xbf16, #tpu.memory_space<vmem>>, vector<16x512xbf16>
    %cst = arith.constant dense<0.000000e+00> : vector<4x512xf32>
    %2 = tpu.matmul %0, %1, %cst {dimension_numbers = #tpu.dot_dimension_numbers<[1], [0], [0], [1], [0, 0, 1, 1], [], []>} : vector<4x16xbf16>, vector<16x512xbf16>, vector<4x512xf32> -> vector<4x512xf32>
    %c0_3 = arith.constant 0 : index
    %c0_4 = arith.constant 0 : index
    %3 = vector.load %arg3[%c0_3, %c0_4] : memref<4x512xf32, #tpu.memory_space<vmem>>, vector<4x512xf32>
    tpu.vector_store %arg3[%c0_3, %c0_4], %2 {strides = array<i32>} : memref<4x512xf32, #tpu.memory_space<vmem>>, vector<4x512xf32>,
    %cst_5 = arith.constant dense<0.000000e+00> : vector<4xf32>
    %4 = vector.multi_reduction <add>, %2, %cst_5 [1] : vector<4x512xf32> to vector<4xf32>
    %5 = vector.shape_cast %4 : vector<4xf32> to vector<4x1xf32>
    %6 = vector.shape_cast %5 : vector<4x1xf32> to vector<1x4x1xf32>
    %c0_6 = arith.constant 0 : index
    %c0_7 = arith.constant 0 : index
    %c0_8 = arith.constant 0 : index
    %7 = vector.load %arg4[%c0_6, %c0_7, %c0_8] : memref<1x4x1xf32, #tpu.memory_space<vmem>>, vector<1x4x1xf32>
    tpu.vector_store %arg4[%c0_6, %c0_7, %c0_8], %6 {strides = array<i32>} : memref<1x4x1xf32, #tpu.memory_space<vmem>>, vector<1x4x1xf32>,
    %8 = arith.mulf %2, %2 : vector<4x512xf32>
    %cst_9 = arith.constant dense<0.000000e+00> : vector<4xf32>
    %9 = vector.multi_reduction <add>, %8, %cst_9 [1] : vector<4x512xf32> to vector<4xf32>
    %10 = vector.shape_cast %9 : vector<4xf32> to vector<4x1xf32>
    %11 = vector.shape_cast %10 : vector<4x1xf32> to vector<1x4x1xf32>
    %c0_10 = arith.constant 0 : index
    %c0_11 = arith.constant 0 : index
    %c0_12 = arith.constant 0 : index
    %12 = vector.load %arg5[%c0_10, %c0_11, %c0_12] : memref<1x4x1xf32, #tpu.memory_space<vmem>>, vector<1x4x1xf32>
    tpu.vector_store %arg5[%c0_10, %c0_11, %c0_12], %11 {strides = array<i32>} : memref<1x4x1xf32, #tpu.memory_space<vmem>>, vector<1x4x1xf32>,
    return
  }
  func.func @transform_0(%arg0: i32) -> (i32, i32) {
    %c0_i32 = arith.constant 0 : i32
    %c0_i32_0 = arith.constant 0 : i32
    %c0_i32_1 = arith.constant 0 : i32
    return %c0_i32, %c0_i32_0 : i32, i32
  }
  func.func @transform_1(%arg0: i32) -> (i32, i32) {
    %c0_i32 = arith.constant 0 : i32
    %c0_i32_0 = arith.constant 0 : i32
    return %c0_i32, %arg0 : i32, i32
  }
  func.func @transform_2(%arg0: i32) -> (i32, i32) {
    %c0_i32 = arith.constant 0 : i32
    %c0_i32_0 = arith.constant 0 : i32
    return %c0_i32, %arg0 : i32, i32
  }
  func.func @transform_3(%arg0: i32) -> (i32, i32, i32) {
    %c0_i32 = arith.constant 0 : i32
    %c0_i32_0 = arith.constant 0 : i32
    %c0_i32_1 = arith.constant 0 : i32
    return %arg0, %c0_i32, %c0_i32_0 : i32, i32, i32
  }
  func.func @transform_4(%arg0: i32) -> (i32, i32, i32) {
    %c0_i32 = arith.constant 0 : i32
    %c0_i32_0 = arith.constant 0 : i32
    %c0_i32_1 = arith.constant 0 : i32
    return %arg0, %c0_i32, %c0_i32_0 : i32, i32, i32
  }
}

module attributes {stable_mosaic.version = 11 : i64} {
  func.func @_gemm_stats_kernel(%arg0: i32, %arg1: memref<4x36xbf16, #tpu.memory_space<vmem>>, %arg2: memref<36x512xbf16, #tpu.memory_space<vmem>>, %arg3: memref<4x512xf32, #tpu.memory_space<vmem>>, %arg4: memref<1x4x1xf32, #tpu.memory_space<vmem>>, %arg5: memref<1x4x1xf32, #tpu.memory_space<vmem>>) attributes {dimension_semantics = [#tpu.dimension_semantics<parallel>], iteration_bounds = array<i64: 1>, scalar_prefetch = 0 : i64, scratch_operands = 0 : i64, tpu.core_type = #tpu.core_type<tc>, window_params = [{pipeline_mode = #tpu.pipeline_mode<synchronous>, transform_indices = @transform_0, window_bounds = array<i64: 4, 36>}, {transform_indices = @transform_1, window_bounds = array<i64: 36, 512>}, {transform_indices = @transform_2, window_bounds = array<i64: 4, 512>}, {transform_indices = @transform_3, window_bounds = array<i64: 1, 4, 1>}, {transform_indices = @transform_4, window_bounds = array<i64: 1, 4, 1>}]} {
    %c0 = arith.constant 0 : index
    %c0_0 = arith.constant 0 : index
    %0 = vector.load %arg1[%c0, %c0_0] : memref<4x36xbf16, #tpu.memory_space<vmem>>, vector<4x36xbf16>
    %c0_1 = arith.constant 0 : index
    %c0_2 = arith.constant 0 : index
    %1 = vector.load %arg2[%c0_1, %c0_2] : memref<36x512xbf16, #tpu.memory_space<vmem>>, vector<36x512xbf16>
    %cst = arith.constant dense<0.000000e+00> : vector<4x512xf32>
    %2 = tpu.matmul %0, %1, %cst {dimension_numbers = #tpu.dot_dimension_numbers<[1], [0], [0], [1], [0, 0, 1, 1], [], []>} : vector<4x36xbf16>, vector<36x512xbf16>, vector<4x512xf32> -> vector<4x512xf32>
    %c0_3 = arith.constant 0 : index
    %c0_4 = arith.constant 0 : index
    %3 = vector.load %arg3[%c0_3, %c0_4] : memref<4x512xf32, #tpu.memory_space<vmem>>, vector<4x512xf32>
    tpu.vector_store %arg3[%c0_3, %c0_4], %2 {strides = array<i32>} : memref<4x512xf32, #tpu.memory_space<vmem>>, vector<4x512xf32>,
    %cst_5 = arith.constant dense<0.000000e+00> : vector<4xf32>
    %4 = vector.multi_reduction <add>, %2, %cst_5 [1] : vector<4x512xf32> to vector<4xf32>
    %5 = vector.shape_cast %4 : vector<4xf32> to vector<4x1xf32>
    %6 = vector.shape_cast %5 : vector<4x1xf32> to vector<1x4x1xf32>
    %c0_6 = arith.constant 0 : index
    %c0_7 = arith.constant 0 : index
    %c0_8 = arith.constant 0 : index
    %7 = vector.load %arg4[%c0_6, %c0_7, %c0_8] : memref<1x4x1xf32, #tpu.memory_space<vmem>>, vector<1x4x1xf32>
    tpu.vector_store %arg4[%c0_6, %c0_7, %c0_8], %6 {strides = array<i32>} : memref<1x4x1xf32, #tpu.memory_space<vmem>>, vector<1x4x1xf32>,
    %8 = arith.mulf %2, %2 : vector<4x512xf32>
    %cst_9 = arith.constant dense<0.000000e+00> : vector<4xf32>
    %9 = vector.multi_reduction <add>, %8, %cst_9 [1] : vector<4x512xf32> to vector<4xf32>
    %10 = vector.shape_cast %9 : vector<4xf32> to vector<4x1xf32>
    %11 = vector.shape_cast %10 : vector<4x1xf32> to vector<1x4x1xf32>
    %c0_10 = arith.constant 0 : index
    %c0_11 = arith.constant 0 : index
    %c0_12 = arith.constant 0 : index
    %12 = vector.load %arg5[%c0_10, %c0_11, %c0_12] : memref<1x4x1xf32, #tpu.memory_space<vmem>>, vector<1x4x1xf32>
    tpu.vector_store %arg5[%c0_10, %c0_11, %c0_12], %11 {strides = array<i32>} : memref<1x4x1xf32, #tpu.memory_space<vmem>>, vector<1x4x1xf32>,
    return
  }
  func.func @transform_0(%arg0: i32) -> (i32, i32) {
    %c0_i32 = arith.constant 0 : i32
    %c0_i32_0 = arith.constant 0 : i32
    %c0_i32_1 = arith.constant 0 : i32
    return %c0_i32, %c0_i32_0 : i32, i32
  }
  func.func @transform_1(%arg0: i32) -> (i32, i32) {
    %c0_i32 = arith.constant 0 : i32
    %c0_i32_0 = arith.constant 0 : i32
    return %c0_i32, %arg0 : i32, i32
  }
  func.func @transform_2(%arg0: i32) -> (i32, i32) {
    %c0_i32 = arith.constant 0 : i32
    %c0_i32_0 = arith.constant 0 : i32
    return %c0_i32, %arg0 : i32, i32
  }
  func.func @transform_3(%arg0: i32) -> (i32, i32, i32) {
    %c0_i32 = arith.constant 0 : i32
    %c0_i32_0 = arith.constant 0 : i32
    %c0_i32_1 = arith.constant 0 : i32
    return %arg0, %c0_i32, %c0_i32_0 : i32, i32, i32
  }
  func.func @transform_4(%arg0: i32) -> (i32, i32, i32) {
    %c0_i32 = arith.constant 0 : i32
    %c0_i32_0 = arith.constant 0 : i32
    %c0_i32_1 = arith.constant 0 : i32
    return %arg0, %c0_i32, %c0_i32_0 : i32, i32, i32
  }
}

module attributes {stable_mosaic.version = 11 : i64} {
  func.func @_bnrelu_gemm_stats_kernel(%arg0: i32, %arg1: memref<16x4xbf16, #tpu.memory_space<vmem>>, %arg2: memref<4x512xf32, #tpu.memory_space<vmem>>, %arg3: memref<4x1xf32, #tpu.memory_space<vmem>>, %arg4: memref<4x1xf32, #tpu.memory_space<vmem>>, %arg5: memref<16x512xf32, #tpu.memory_space<vmem>>, %arg6: memref<1x16x1xf32, #tpu.memory_space<vmem>>, %arg7: memref<1x16x1xf32, #tpu.memory_space<vmem>>) attributes {dimension_semantics = [#tpu.dimension_semantics<parallel>], iteration_bounds = array<i64: 1>, scalar_prefetch = 0 : i64, scratch_operands = 0 : i64, tpu.core_type = #tpu.core_type<tc>, window_params = [{pipeline_mode = #tpu.pipeline_mode<synchronous>, transform_indices = @transform_0, window_bounds = array<i64: 16, 4>}, {transform_indices = @transform_1, window_bounds = array<i64: 4, 512>}, {pipeline_mode = #tpu.pipeline_mode<synchronous>, transform_indices = @transform_2, window_bounds = array<i64: 4, 1>}, {pipeline_mode = #tpu.pipeline_mode<synchronous>, transform_indices = @transform_3, window_bounds = array<i64: 4, 1>}, {transform_indices = @transform_4, window_bounds = array<i64: 16, 512>}, {transform_indices = @transform_5, window_bounds = array<i64: 1, 16, 1>}, {transform_indices = @transform_6, window_bounds = array<i64: 1, 16, 1>}]} {
    %c0 = arith.constant 0 : index
    %c0_0 = arith.constant 0 : index
    %0 = vector.load %arg2[%c0, %c0_0] : memref<4x512xf32, #tpu.memory_space<vmem>>, vector<4x512xf32>
    %c0_1 = arith.constant 0 : index
    %c0_2 = arith.constant 0 : index
    %1 = vector.load %arg3[%c0_1, %c0_2] : memref<4x1xf32, #tpu.memory_space<vmem>>, vector<4x1xf32>
    %2 = vector.broadcast %1 : vector<4x1xf32> to vector<4x512xf32>
    %3 = arith.mulf %0, %2 : vector<4x512xf32>
    %c0_3 = arith.constant 0 : index
    %c0_4 = arith.constant 0 : index
    %4 = vector.load %arg4[%c0_3, %c0_4] : memref<4x1xf32, #tpu.memory_space<vmem>>, vector<4x1xf32>
    %5 = vector.broadcast %4 : vector<4x1xf32> to vector<4x512xf32>
    %6 = arith.addf %3, %5 : vector<4x512xf32>
    %cst = arith.constant 0.000000e+00 : f32
    %7 = vector.broadcast %cst : f32 to vector<4x512xf32>
    %8 = arith.maximumf %6, %7 : vector<4x512xf32>
    %c0_5 = arith.constant 0 : index
    %c0_6 = arith.constant 0 : index
    %9 = vector.load %arg1[%c0_5, %c0_6] : memref<16x4xbf16, #tpu.memory_space<vmem>>, vector<16x4xbf16>
    %10 = arith.truncf %8 : vector<4x512xf32> to vector<4x512xbf16>
    %cst_7 = arith.constant dense<0.000000e+00> : vector<16x512xf32>
    %11 = tpu.matmul %9, %10, %cst_7 {dimension_numbers = #tpu.dot_dimension_numbers<[1], [0], [0], [1], [0, 0, 1, 1], [], []>} : vector<16x4xbf16>, vector<4x512xbf16>, vector<16x512xf32> -> vector<16x512xf32>
    %c0_8 = arith.constant 0 : index
    %c0_9 = arith.constant 0 : index
    %12 = vector.load %arg5[%c0_8, %c0_9] : memref<16x512xf32, #tpu.memory_space<vmem>>, vector<16x512xf32>
    tpu.vector_store %arg5[%c0_8, %c0_9], %11 {strides = array<i32>} : memref<16x512xf32, #tpu.memory_space<vmem>>, vector<16x512xf32>,
    %cst_10 = arith.constant dense<0.000000e+00> : vector<16xf32>
    %13 = vector.multi_reduction <add>, %11, %cst_10 [1] : vector<16x512xf32> to vector<16xf32>
    %14 = vector.shape_cast %13 : vector<16xf32> to vector<16x1xf32>
    %15 = vector.shape_cast %14 : vector<16x1xf32> to vector<1x16x1xf32>
    %c0_11 = arith.constant 0 : index
    %c0_12 = arith.constant 0 : index
    %c0_13 = arith.constant 0 : index
    %16 = vector.load %arg6[%c0_11, %c0_12, %c0_13] : memref<1x16x1xf32, #tpu.memory_space<vmem>>, vector<1x16x1xf32>
    tpu.vector_store %arg6[%c0_11, %c0_12, %c0_13], %15 {strides = array<i32>} : memref<1x16x1xf32, #tpu.memory_space<vmem>>, vector<1x16x1xf32>,
    %17 = arith.mulf %11, %11 : vector<16x512xf32>
    %cst_14 = arith.constant dense<0.000000e+00> : vector<16xf32>
    %18 = vector.multi_reduction <add>, %17, %cst_14 [1] : vector<16x512xf32> to vector<16xf32>
    %19 = vector.shape_cast %18 : vector<16xf32> to vector<16x1xf32>
    %20 = vector.shape_cast %19 : vector<16x1xf32> to vector<1x16x1xf32>
    %c0_15 = arith.constant 0 : index
    %c0_16 = arith.constant 0 : index
    %c0_17 = arith.constant 0 : index
    %21 = vector.load %arg7[%c0_15, %c0_16, %c0_17] : memref<1x16x1xf32, #tpu.memory_space<vmem>>, vector<1x16x1xf32>
    tpu.vector_store %arg7[%c0_15, %c0_16, %c0_17], %20 {strides = array<i32>} : memref<1x16x1xf32, #tpu.memory_space<vmem>>, vector<1x16x1xf32>,
    return
  }
  func.func @transform_0(%arg0: i32) -> (i32, i32) {
    %c0_i32 = arith.constant 0 : i32
    %c0_i32_0 = arith.constant 0 : i32
    %c0_i32_1 = arith.constant 0 : i32
    return %c0_i32, %c0_i32_0 : i32, i32
  }
  func.func @transform_1(%arg0: i32) -> (i32, i32) {
    %c0_i32 = arith.constant 0 : i32
    %c0_i32_0 = arith.constant 0 : i32
    return %c0_i32, %arg0 : i32, i32
  }
  func.func @transform_2(%arg0: i32) -> (i32, i32) {
    %c0_i32 = arith.constant 0 : i32
    %c0_i32_0 = arith.constant 0 : i32
    %c0_i32_1 = arith.constant 0 : i32
    return %c0_i32, %c0_i32_0 : i32, i32
  }
  func.func @transform_3(%arg0: i32) -> (i32, i32) {
    %c0_i32 = arith.constant 0 : i32
    %c0_i32_0 = arith.constant 0 : i32
    %c0_i32_1 = arith.constant 0 : i32
    return %c0_i32, %c0_i32_0 : i32, i32
  }
  func.func @transform_4(%arg0: i32) -> (i32, i32) {
    %c0_i32 = arith.constant 0 : i32
    %c0_i32_0 = arith.constant 0 : i32
    return %c0_i32, %arg0 : i32, i32
  }
  func.func @transform_5(%arg0: i32) -> (i32, i32, i32) {
    %c0_i32 = arith.constant 0 : i32
    %c0_i32_0 = arith.constant 0 : i32
    %c0_i32_1 = arith.constant 0 : i32
    return %arg0, %c0_i32, %c0_i32_0 : i32, i32, i32
  }
  func.func @transform_6(%arg0: i32) -> (i32, i32, i32) {
    %c0_i32 = arith.constant 0 : i32
    %c0_i32_0 = arith.constant 0 : i32
    %c0_i32_1 = arith.constant 0 : i32
    return %arg0, %c0_i32, %c0_i32_0 : i32, i32, i32
  }
}

module attributes {stable_mosaic.version = 11 : i64} {
  func.func @_bn_add_relu_kernel(%arg0: i32, %arg1: memref<16x512xf32, #tpu.memory_space<vmem>>, %arg2: memref<16x1xf32, #tpu.memory_space<vmem>>, %arg3: memref<16x1xf32, #tpu.memory_space<vmem>>, %arg4: memref<16x512xf32, #tpu.memory_space<vmem>>, %arg5: memref<16x512xf32, #tpu.memory_space<vmem>>) attributes {dimension_semantics = [#tpu.dimension_semantics<parallel>], iteration_bounds = array<i64: 1>, scalar_prefetch = 0 : i64, scratch_operands = 0 : i64, tpu.core_type = #tpu.core_type<tc>, window_params = [{transform_indices = @transform_0, window_bounds = array<i64: 16, 512>}, {pipeline_mode = #tpu.pipeline_mode<synchronous>, transform_indices = @transform_1, window_bounds = array<i64: 16, 1>}, {pipeline_mode = #tpu.pipeline_mode<synchronous>, transform_indices = @transform_2, window_bounds = array<i64: 16, 1>}, {transform_indices = @transform_3, window_bounds = array<i64: 16, 512>}, {transform_indices = @transform_4, window_bounds = array<i64: 16, 512>}]} {
    %c0 = arith.constant 0 : index
    %c0_0 = arith.constant 0 : index
    %0 = vector.load %arg1[%c0, %c0_0] : memref<16x512xf32, #tpu.memory_space<vmem>>, vector<16x512xf32>
    %c0_1 = arith.constant 0 : index
    %c0_2 = arith.constant 0 : index
    %1 = vector.load %arg2[%c0_1, %c0_2] : memref<16x1xf32, #tpu.memory_space<vmem>>, vector<16x1xf32>
    %2 = vector.broadcast %1 : vector<16x1xf32> to vector<16x512xf32>
    %3 = arith.mulf %0, %2 : vector<16x512xf32>
    %c0_3 = arith.constant 0 : index
    %c0_4 = arith.constant 0 : index
    %4 = vector.load %arg3[%c0_3, %c0_4] : memref<16x1xf32, #tpu.memory_space<vmem>>, vector<16x1xf32>
    %5 = vector.broadcast %4 : vector<16x1xf32> to vector<16x512xf32>
    %6 = arith.addf %3, %5 : vector<16x512xf32>
    %c0_5 = arith.constant 0 : index
    %c0_6 = arith.constant 0 : index
    %7 = vector.load %arg4[%c0_5, %c0_6] : memref<16x512xf32, #tpu.memory_space<vmem>>, vector<16x512xf32>
    %8 = arith.addf %6, %7 : vector<16x512xf32>
    %cst = arith.constant 0.000000e+00 : f32
    %9 = vector.broadcast %cst : f32 to vector<16x512xf32>
    %10 = arith.maximumf %8, %9 : vector<16x512xf32>
    %c0_7 = arith.constant 0 : index
    %c0_8 = arith.constant 0 : index
    %11 = vector.load %arg5[%c0_7, %c0_8] : memref<16x512xf32, #tpu.memory_space<vmem>>, vector<16x512xf32>
    tpu.vector_store %arg5[%c0_7, %c0_8], %10 {strides = array<i32>} : memref<16x512xf32, #tpu.memory_space<vmem>>, vector<16x512xf32>,
    return
  }
  func.func @transform_0(%arg0: i32) -> (i32, i32) {
    %c0_i32 = arith.constant 0 : i32
    %c0_i32_0 = arith.constant 0 : i32
    return %c0_i32, %arg0 : i32, i32
  }
  func.func @transform_1(%arg0: i32) -> (i32, i32) {
    %c0_i32 = arith.constant 0 : i32
    %c0_i32_0 = arith.constant 0 : i32
    %c0_i32_1 = arith.constant 0 : i32
    return %c0_i32, %c0_i32_0 : i32, i32
  }
  func.func @transform_2(%arg0: i32) -> (i32, i32) {
    %c0_i32 = arith.constant 0 : i32
    %c0_i32_0 = arith.constant 0 : i32
    %c0_i32_1 = arith.constant 0 : i32
    return %c0_i32, %c0_i32_0 : i32, i32
  }
  func.func @transform_3(%arg0: i32) -> (i32, i32) {
    %c0_i32 = arith.constant 0 : i32
    %c0_i32_0 = arith.constant 0 : i32
    return %c0_i32, %arg0 : i32, i32
  }
  func.func @transform_4(%arg0: i32) -> (i32, i32) {
    %c0_i32 = arith.constant 0 : i32
    %c0_i32_0 = arith.constant 0 : i32
    return %c0_i32, %arg0 : i32, i32
  }
}

</mosaic_0001>

<llo_original>
// kernel: bottleneck_dhp_forward.4
$region0: #{bottleneck_dhp_forward.4}
  #allocation0 [shape = 'u32[]', space=smem, size = 0x4, offset = 0x4, fixed_abs, tag = 'smem constant byte address 0x4 - core index']
  #allocation1 [shape = 'u32[72,128]{1,0:T(1,128)}', space=vmem, size = 0x9000, scoped, tag = 'internal scratch']
  %s0 = inlined_call_operand.vmem [shape: bf16[4,16], index: 0, kind: input, shape index: {}]
  %s1 = inlined_call_operand.vmem [shape: bf16[16,512], index: 1, kind: input, shape index: {}]
  %s2 = inlined_call_operand.vmem [shape: f32[4,512], index: 2, kind: output, shape index: {0}]
  %s3 = inlined_call_operand.vmem [shape: f32[1,4,1], index: 3, kind: output, shape index: {1}]
  %s4 = inlined_call_operand.vmem [shape: f32[1,4,1], index: 4, kind: output, shape index: {2}]
  %5 = xla_tuple %s2, %s3, %s4
  %s6 = sld [smem:[#allocation0]]
  $region34: #{bottleneck_dhp_forward.4} parent=0
    _
  %s8 = ssub.s32 1, %s6
  %s9 = scalar_select 0, %s8, %s6
  // Predicated region
  $region2: #{bottleneck_dhp_forward.4} parent=0 // pred_check
    _
  $region3: #{bottleneck_dhp_forward.4} parent=0 // pred_check_branch
    %11 = sbr.rel (0) target = $region5
  $region4: #{bottleneck_dhp_forward.4} parent=0 // pred_region
    _
  $region5: #{bottleneck_dhp_forward.4} parent=0 // pred_fallthru
    _
  // Predicated region
  $region6: #{bottleneck_dhp_forward.4} parent=0 // pred_check
    _
  $region7: #{bottleneck_dhp_forward.4} parent=0 // pred_check_branch
    %13 = sbr.rel (0) target = $region9
  $region8: #{bottleneck_dhp_forward.4} parent=0 // pred_region
    _
  $region9: #{bottleneck_dhp_forward.4} parent=0 // pred_fallthru
    _
  %v15 = vld [vmem:[%s0] sm:$0x3]
  %v16 = vld [vmem:[%s1] sm:$0xff]
  %v17 = vld [vmem:[%s1 + $0x8] sm:$0xff]
  %v18 = vld [vmem:[%s1 + $0x10] sm:$0xff]
  %v19 = vld [vmem:[%s1 + $0x18] sm:$0xff]
  %v24 = vunpack.c.l.b16 %v16
  %v25 = vunpack.c.h.b16 %v16
  %v26 = vunpack.c.l.b16 %v17
  %v27 = vunpack.c.h.b16 %v17
  %v28 = vunpack.c.l.b16 %v18
  %v29 = vunpack.c.h.b16 %v18
  %v30 = vunpack.c.l.b16 %v19
  %v31 = vunpack.c.h.b16 %v19
  %v32 = vpack.c.b16 %v28, %v24
  %v33 = vpack.c.b16 %v29, %v25
  %v34 = vpack.c.b16 %v30, %v26
  %v35 = vpack.c.b16 %v31, %v27
  %vm40 = vcmask 130048
  %v42 = vsel %vm40, %v15, 0
  %44 = vmatpush.bf16.msra.mxu0 0
  %45 = vmatpush.bf16.msra.mxu0 0
  %46 = vmatpush.bf16.msra.mxu0 0
  %47 = vmatpush.bf16.msra.mxu0 0
  %48 = vmatpush.bf16.msra.mxu0 0
  %49 = vmatpush.bf16.msra.mxu0 0
  %50 = vmatpush.bf16.msra.mxu0 0
  %51 = vmatpush.bf16.msra.mxu0 %v32
  %52 = vmatmul.bf16.gmra.mxu0 %v42
  %v53 = vpop.f32.mrf.mxu0
  %v54 = vadd.f32 0.0, %v53
  %v55 = vpop.f32.mrf.mxu0
  %56 = vdwg.mxu0
  %57 = vmatpush.bf16.msra.mxu0 0
  %58 = vmatpush.bf16.msra.mxu0 0
  %59 = vmatpush.bf16.msra.mxu0 0
  %60 = vmatpush.bf16.msra.mxu0 0
  %61 = vmatpush.bf16.msra.mxu0 0
  %62 = vmatpush.bf16.msra.mxu0 0
  %63 = vmatpush.bf16.msra.mxu0 0
  %64 = vmatpush.bf16.msra.mxu0 %v33
  %65 = vmatmul.bf16.gmra.mxu0 %v42
  %v66 = vpop.f32.mrf.mxu0
  %v67 = vadd.f32 0.0, %v66
  %v68 = vpop.f32.mrf.mxu0
  %69 = vdwg.mxu0
  %70 = vmatpush.bf16.msra.mxu0 0
  %71 = vmatpush.bf16.msra.mxu0 0
  %72 = vmatpush.bf16.msra.mxu0 0
  %73 = vmatpush.bf16.msra.mxu0 0
  %74 = vmatpush.bf16.msra.mxu0 0
  %75 = vmatpush.bf16.msra.mxu0 0
  %76 = vmatpush.bf16.msra.mxu0 0
  %77 = vmatpush.bf16.msra.mxu0 %v34
  %78 = vmatmul.bf16.gmra.mxu0 %v42
  %v79 = vpop.f32.mrf.mxu0
  %v80 = vadd.f32 0.0, %v79
  %v81 = vpop.f32.mrf.mxu0
  %82 = vdwg.mxu0
  %83 = vmatpush.bf16.msra.mxu0 0
  %84 = vmatpush.bf16.msra.mxu0 0
  %85 = vmatpush.bf16.msra.mxu0 0
  %86 = vmatpush.bf16.msra.mxu0 0
  %87 = vmatpush.bf16.msra.mxu0 0
  %88 = vmatpush.bf16.msra.mxu0 0
  %89 = vmatpush.bf16.msra.mxu0 0
  %90 = vmatpush.bf16.msra.mxu0 %v35
  %91 = vmatmul.bf16.gmra.mxu0 %v42
  %v92 = vpop.f32.mrf.mxu0
  %v93 = vadd.f32 0.0, %v92
  %v94 = vpop.f32.mrf.mxu0
  %95 = vdwg.mxu0
  %v100 = vrot.slane %v67, 4
  %v101 = vrot.slane %v93, 4
  %vm102 = vcmask 1043456
  %v103 = vsel %vm102, %v54, %v100
  %v104 = vsel %vm102, %v80, %v101
  %107 = vst [vmem:[%s2] sm:$0xff] %v103
  %108 = vst [vmem:[%s2 + $0x8] sm:$0xff] %v104
  %v109 = vsel %vm102, %v54, 0.0
  %v110 = vsel %vm102, %v67, 0.0
  %v111 = vadd.f32 %v109, %v110
  %v112 = vsel %vm102, %v80, 0.0
  %v113 = vadd.f32 %v111, %v112
  %v114 = vsel %vm102, %v93, 0.0
  %v115 = vadd.f32 %v113, %v114
  %116 = vadd.xlane.f32.xlu0 %v115
  %v117 = vpop.xlane.xlu0 %116
  %vm118 = vcmask 3072
  %119 = vst.msk [vmem:[%s3] sm:$0xf] %vm118, %v117
  %v120 = vmul.f32 %v54, %v54
  %v121 = vmul.f32 %v67, %v67
  %v122 = vmul.f32 %v80, %v80
  %v123 = vmul.f32 %v93, %v93
  %v124 = vsel %vm102, %v120, 0.0
  %v125 = vsel %vm102, %v121, 0.0
  %v126 = vadd.f32 %v124, %v125
  %v127 = vsel %vm102, %v122, 0.0
  %v128 = vadd.f32 %v126, %v127
  %v129 = vsel %vm102, %v123, 0.0
  %v130 = vadd.f32 %v128, %v129
  %131 = vadd.xlane.f32.xlu0 %v130
  %v132 = vpop.xlane.xlu0 %131
  %133 = vst.msk [vmem:[%s4] sm:$0xf] %vm118, %v132
  // Predicated region
  $region10: #{bottleneck_dhp_forward.4} parent=0 // pred_check
    _
  $region11: #{bottleneck_dhp_forward.4} parent=0 // pred_check_branch
    %135 = sbr.rel (0) target = $region13
  $region12: #{bottleneck_dhp_forward.4} parent=0 // pred_region
    _
  $region13: #{bottleneck_dhp_forward.4} parent=0 // pred_fallthru
    _
  // Predicated region
  $region14: #{bottleneck_dhp_forward.4} parent=0 // pred_check
    _
  $region15: #{bottleneck_dhp_forward.4} parent=0 // pred_check_branch
    %137 = sbr.rel (0) target = $region17
  $region16: #{bottleneck_dhp_forward.4} parent=0 // pred_region
    _
  $region17: #{bottleneck_dhp_forward.4} parent=0 // pred_fallthru
    _
  // Predicated region
  $region18: #{bottleneck_dhp_forward.4} parent=0 // pred_check
    _
  $region19: #{bottleneck_dhp_forward.4} parent=0 // pred_check_branch
    %139 = sbr.rel (0) target = $region21
  $region20: #{bottleneck_dhp_forward.4} parent=0 // pred_region
    _
  $region21: #{bottleneck_dhp_forward.4} parent=0 // pred_fallthru
    _
  // Predicated region
  $region22: #{bottleneck_dhp_forward.4} parent=0 // pred_check
    _
  $region23: #{bottleneck_dhp_forward.4} parent=0 // pred_check_branch
    %141 = sbr.rel (0) target = $region25
  $region24: #{bottleneck_dhp_forward.4} parent=0 // pred_region
    _
  $region25: #{bottleneck_dhp_forward.4} parent=0 // pred_fallthru
    _
  // Predicated region
  $region26: #{bottleneck_dhp_forward.4} parent=0 // pred_check
    _
  $region27: #{bottleneck_dhp_forward.4} parent=0 // pred_check_branch
    %143 = sbr.rel (0) target = $region29
  $region28: #{bottleneck_dhp_forward.4} parent=0 // pred_region
    _
  $region29: #{bottleneck_dhp_forward.4} parent=0 // pred_fallthru
    _
  // Predicated region
  $region30: #{bottleneck_dhp_forward.4} parent=0 // pred_check
    _
  $region31: #{bottleneck_dhp_forward.4} parent=0 // pred_check_branch
    %145 = sbr.rel (0) target = $region33
  $region32: #{bottleneck_dhp_forward.4} parent=0 // pred_region
    _
  $region33: #{bottleneck_dhp_forward.4} parent=0 // pred_fallthru
    _

// kernel: bottleneck_dhp_forward.5
$region0: #{bottleneck_dhp_forward.5}
  #allocation0 [shape = 'u32[]', space=smem, size = 0x4, offset = 0x4, fixed_abs, tag = 'smem constant byte address 0x4 - core index']
  #allocation1 [shape = 'u32[72,128]{1,0:T(1,128)}', space=vmem, size = 0x9000, scoped, tag = 'internal scratch']
  %s0 = inlined_call_operand.vmem [shape: bf16[4,36], index: 0, kind: input, shape index: {}]
  %s1 = inlined_call_operand.vmem [shape: bf16[36,512], index: 1, kind: input, shape index: {}]
  %s2 = inlined_call_operand.vmem [shape: f32[4,512], index: 2, kind: output, shape index: {0}]
  %s3 = inlined_call_operand.vmem [shape: f32[1,4,1], index: 3, kind: output, shape index: {1}]
  %s4 = inlined_call_operand.vmem [shape: f32[1,4,1], index: 4, kind: output, shape index: {2}]
  %5 = xla_tuple %s2, %s3, %s4
  %s6 = sld [smem:[#allocation0]]
  $region34: #{bottleneck_dhp_forward.5} parent=0
    _
  %s8 = ssub.s32 1, %s6
  %s9 = scalar_select 0, %s8, %s6
  // Predicated region
  $region2: #{bottleneck_dhp_forward.5} parent=0 // pred_check
    _
  $region3: #{bottleneck_dhp_forward.5} parent=0 // pred_check_branch
    %11 = sbr.rel (0) target = $region5
  $region4: #{bottleneck_dhp_forward.5} parent=0 // pred_region
    _
  $region5: #{bottleneck_dhp_forward.5} parent=0 // pred_fallthru
    _
  // Predicated region
  $region6: #{bottleneck_dhp_forward.5} parent=0 // pred_check
    _
  $region7: #{bottleneck_dhp_forward.5} parent=0 // pred_check_branch
    %13 = sbr.rel (0) target = $region9
  $region8: #{bottleneck_dhp_forward.5} parent=0 // pred_region
    _
  $region9: #{bottleneck_dhp_forward.5} parent=0 // pred_fallthru
    _
  %v15 = vld [vmem:[%s0] sm:$0x3]
  %v16 = vld [vmem:[%s1] sm:$0xff]
  %v17 = vld [vmem:[%s1 + $0x8] sm:$0xff]
  %v18 = vld [vmem:[%s1 + $0x10] sm:$0xff]
  %v19 = vld [vmem:[%s1 + $0x18] sm:$0xff]
  %v20 = vld [vmem:[%s1 + $0x20] sm:$0xff]
  %v21 = vld [vmem:[%s1 + $0x28] sm:$0xff]
  %v22 = vld [vmem:[%s1 + $0x30] sm:$0xff]
  %v23 = vld [vmem:[%s1 + $0x38] sm:$0xff]
  %v24 = vld [vmem:[%s1 + $0x40] sm:$0x33]
  %v25 = vld [vmem:[%s1 + $0x48] sm:$0x33]
  %v36 = vunpack.c.l.b16 %v16
  %v37 = vunpack.c.h.b16 %v16
  %v38 = vunpack.c.l.b16 %v17
  %v39 = vunpack.c.h.b16 %v17
  %v40 = vunpack.c.l.b16 %v18
  %v41 = vunpack.c.h.b16 %v18
  %v42 = vunpack.c.l.b16 %v19
  %v43 = vunpack.c.h.b16 %v19
  %v44 = vunpack.c.l.b16 %v20
  %v45 = vunpack.c.h.b16 %v20
  %v46 = vunpack.c.l.b16 %v21
  %v47 = vunpack.c.h.b16 %v21
  %v48 = vunpack.c.l.b16 %v22
  %v49 = vunpack.c.h.b16 %v22
  %v50 = vunpack.c.l.b16 %v23
  %v51 = vunpack.c.h.b16 %v23
  %v52 = vunpack.c.l.b16 %v24
  %v53 = vunpack.c.h.b16 %v24
  %v54 = vunpack.c.l.b16 %v25
  %v55 = vunpack.c.h.b16 %v25
  %v56 = vpack.c.b16 %v40, %v36
  %v57 = vpack.c.b16 %v41, %v37
  %v58 = vpack.c.b16 %v42, %v38
  %v59 = vpack.c.b16 %v43, %v39
  %v60 = vpack.c.b16 %v48, %v44
  %v61 = vpack.c.b16 %v49, %v45
  %v62 = vpack.c.b16 %v50, %v46
  %v63 = vpack.c.b16 %v51, %v47
  %v64 = vpack.c.b16 %v52, %v52
  %v65 = vpack.c.b16 %v53, %v53
  %v66 = vpack.c.b16 %v54, %v54
  %v67 = vpack.c.b16 %v55, %v55
  %vm76 = vcmask 293888
  %v78 = vsel %vm76, %v15, 0
  %vm80 = vcmask 1041408
  %v82 = vsel %vm80, %v64, 0
  %v85 = vsel %vm80, %v65, 0
  %v88 = vsel %vm80, %v66, 0
  %v91 = vsel %vm80, %v67, 0
  %93 = vmatpush.bf16.msra.mxu0 0
  %94 = vmatpush.bf16.msra.mxu0 0
  %95 = vmatpush.bf16.msra.mxu0 0
  %96 = vmatpush.bf16.msra.mxu0 0
  %97 = vmatpush.bf16.msra.mxu0 0
  %98 = vmatpush.bf16.msra.mxu0 %v82
  %99 = vmatpush.bf16.msra.mxu0 %v60
  %100 = vmatpush.bf16.msra.mxu0 %v56
  %101 = vmatmul.bf16.gmra.mxu0 %v78
  %v102 = vpop.f32.mrf.mxu0
  %v103 = vadd.f32 0.0, %v102
  %v104 = vpop.f32.mrf.mxu0
  %105 = vdwg.mxu0
  %106 = vmatpush.bf16.msra.mxu0 0
  %107 = vmatpush.bf16.msra.mxu0 0
  %108 = vmatpush.bf16.msra.mxu0 0
  %109 = vmatpush.bf16.msra.mxu0 0
  %110 = vmatpush.bf16.msra.mxu0 0
  %111 = vmatpush.bf16.msra.mxu0 %v85
  %112 = vmatpush.bf16.msra.mxu0 %v61
  %113 = vmatpush.bf16.msra.mxu0 %v57
  %114 = vmatmul.bf16.gmra.mxu0 %v78
  %v115 = vpop.f32.mrf.mxu0
  %v116 = vadd.f32 0.0, %v115
  %v117 = vpop.f32.mrf.mxu0
  %118 = vdwg.mxu0
  %119 = vmatpush.bf16.msra.mxu0 0
  %120 = vmatpush.bf16.msra.mxu0 0
  %121 = vmatpush.bf16.msra.mxu0 0
  %122 = vmatpush.bf16.msra.mxu0 0
  %123 = vmatpush.bf16.msra.mxu0 0
  %124 = vmatpush.bf16.msra.mxu0 %v88
  %125 = vmatpush.bf16.msra.mxu0 %v62
  %126 = vmatpush.bf16.msra.mxu0 %v58
  %127 = vmatmul.bf16.gmra.mxu0 %v78
  %v128 = vpop.f32.mrf.mxu0
  %v129 = vadd.f32 0.0, %v128
  %v130 = vpop.f32.mrf.mxu0
  %131 = vdwg.mxu0
  %132 = vmatpush.bf16.msra.mxu0 0
  %133 = vmatpush.bf16.msra.mxu0 0
  %134 = vmatpush.bf16.msra.mxu0 0
  %135 = vmatpush.bf16.msra.mxu0 0
  %136 = vmatpush.bf16.msra.mxu0 0
  %137 = vmatpush.bf16.msra.mxu0 %v91
  %138 = vmatpush.bf16.msra.mxu0 %v63
  %139 = vmatpush.bf16.msra.mxu0 %v59
  %140 = vmatmul.bf16.gmra.mxu0 %v78
  %v141 = vpop.f32.mrf.mxu0
  %v142 = vadd.f32 0.0, %v141
  %v143 = vpop.f32.mrf.mxu0
  %144 = vdwg.mxu0
  %v149 = vrot.slane %v116, 4
  %v150 = vrot.slane %v142, 4
  %vm151 = vcmask 1043456
  %v152 = vsel %vm151, %v103, %v149
  %v153 = vsel %vm151, %v129, %v150
  %156 = vst [vmem:[%s2] sm:$0xff] %v152
  %157 = vst [vmem:[%s2 + $0x8] sm:$0xff] %v153
  %v158 = vsel %vm151, %v103, 0.0
  %v159 = vsel %vm151, %v116, 0.0
  %v160 = vadd.f32 %v158, %v159
  %v161 = vsel %vm151, %v129, 0.0
  %v162 = vadd.f32 %v160, %v161
  %v163 = vsel %vm151, %v142, 0.0
  %v164 = vadd.f32 %v162, %v163
  %165 = vadd.xlane.f32.xlu0 %v164
  %v166 = vpop.xlane.xlu0 %165
  %vm167 = vcmask 3072
  %168 = vst.msk [vmem:[%s3] sm:$0xf] %vm167, %v166
  %v169 = vmul.f32 %v103, %v103
  %v170 = vmul.f32 %v116, %v116
  %v171 = vmul.f32 %v129, %v129
  %v172 = vmul.f32 %v142, %v142
  %v173 = vsel %vm151, %v169, 0.0
  %v174 = vsel %vm151, %v170, 0.0
  %v175 = vadd.f32 %v173, %v174
  %v176 = vsel %vm151, %v171, 0.0
  %v177 = vadd.f32 %v175, %v176
  %v178 = vsel %vm151, %v172, 0.0
  %v179 = vadd.f32 %v177, %v178
  %180 = vadd.xlane.f32.xlu0 %v179
  %v181 = vpop.xlane.xlu0 %180
  %182 = vst.msk [vmem:[%s4] sm:$0xf] %vm167, %v181
  // Predicated region
  $region10: #{bottleneck_dhp_forward.5} parent=0 // pred_check
    _
  $region11: #{bottleneck_dhp_forward.5} parent=0 // pred_check_branch
    %184 = sbr.rel (0) target = $region13
  $region12: #{bottleneck_dhp_forward.5} parent=0 // pred_region
    _
  $region13: #{bottleneck_dhp_forward.5} parent=0 // pred_fallthru
    _
  // Predicated region
  $region14: #{bottleneck_dhp_forward.5} parent=0 // pred_check
    _
  $region15: #{bottleneck_dhp_forward.5} parent=0 // pred_check_branch
    %186 = sbr.rel (0) target = $region17
  $region16: #{bottleneck_dhp_forward.5} parent=0 // pred_region
    _
  $region17: #{bottleneck_dhp_forward.5} parent=0 // pred_fallthru
    _
  // Predicated region
  $region18: #{bottleneck_dhp_forward.5} parent=0 // pred_check
    _
  $region19: #{bottleneck_dhp_forward.5} parent=0 // pred_check_branch
    %188 = sbr.rel (0) target = $region21
  $region20: #{bottleneck_dhp_forward.5} parent=0 // pred_region
    _
  $region21: #{bottleneck_dhp_forward.5} parent=0 // pred_fallthru
    _
  // Predicated region
  $region22: #{bottleneck_dhp_forward.5} parent=0 // pred_check
    _
  $region23: #{bottleneck_dhp_forward.5} parent=0 // pred_check_branch
    %190 = sbr.rel (0) target = $region25
  $region24: #{bottleneck_dhp_forward.5} parent=0 // pred_region
    _
  $region25: #{bottleneck_dhp_forward.5} parent=0 // pred_fallthru
    _
  // Predicated region
  $region26: #{bottleneck_dhp_forward.5} parent=0 // pred_check
    _
  $region27: #{bottleneck_dhp_forward.5} parent=0 // pred_check_branch
    %192 = sbr.rel (0) target = $region29
  $region28: #{bottleneck_dhp_forward.5} parent=0 // pred_region
    _
  $region29: #{bottleneck_dhp_forward.5} parent=0 // pred_fallthru
    _
  // Predicated region
  $region30: #{bottleneck_dhp_forward.5} parent=0 // pred_check
    _
  $region31: #{bottleneck_dhp_forward.5} parent=0 // pred_check_branch
    %194 = sbr.rel (0) target = $region33
  $region32: #{bottleneck_dhp_forward.5} parent=0 // pred_region
    _
  $region33: #{bottleneck_dhp_forward.5} parent=0 // pred_fallthru
    _

// kernel: bottleneck_dhp_forward.6
$region0: #{bottleneck_dhp_forward.6}
  #allocation0 [shape = 'u32[]', space=smem, size = 0x4, offset = 0x4, fixed_abs, tag = 'smem constant byte address 0x4 - core index']
  #allocation1 [shape = 'u32[72,128]{1,0:T(1,128)}', space=vmem, size = 0x9000, scoped, tag = 'internal scratch']
  %s0 = inlined_call_operand.vmem [shape: bf16[16,4], index: 0, kind: input, shape index: {}]
  %s1 = inlined_call_operand.vmem [shape: f32[4,512], index: 1, kind: input, shape index: {}]
  %s2 = inlined_call_operand.vmem [shape: f32[4,1], index: 2, kind: input, shape index: {}]
  %s3 = inlined_call_operand.vmem [shape: f32[4,1], index: 3, kind: input, shape index: {}]
  %s4 = inlined_call_operand.vmem [shape: f32[16,512], index: 4, kind: output, shape index: {0}]
  %s5 = inlined_call_operand.vmem [shape: f32[1,16,1], index: 5, kind: output, shape index: {1}]
  %s6 = inlined_call_operand.vmem [shape: f32[1,16,1], index: 6, kind: output, shape index: {2}]
  %7 = xla_tuple %s4, %s5, %s6
  %s8 = sld [smem:[#allocation0]]
  $region42: #{bottleneck_dhp_forward.6} parent=0
    _
  %s10 = ssub.s32 1, %s8
  %s11 = scalar_select 0, %s10, %s8
  // Predicated region
  $region2: #{bottleneck_dhp_forward.6} parent=0 // pred_check
    _
  $region3: #{bottleneck_dhp_forward.6} parent=0 // pred_check_branch
    %13 = sbr.rel (0) target = $region5
  $region4: #{bottleneck_dhp_forward.6} parent=0 // pred_region
    _
  $region5: #{bottleneck_dhp_forward.6} parent=0 // pred_fallthru
    _
  // Predicated region
  $region6: #{bottleneck_dhp_forward.6} parent=0 // pred_check
    _
  $region7: #{bottleneck_dhp_forward.6} parent=0 // pred_check_branch
    %15 = sbr.rel (0) target = $region9
  $region8: #{bottleneck_dhp_forward.6} parent=0 // pred_region
    _
  $region9: #{bottleneck_dhp_forward.6} parent=0 // pred_fallthru
    _
  // Predicated region
  $region10: #{bottleneck_dhp_forward.6} parent=0 // pred_check
    _
  $region11: #{bottleneck_dhp_forward.6} parent=0 // pred_check_branch
    %17 = sbr.rel (0) target = $region13
  $region12: #{bottleneck_dhp_forward.6} parent=0 // pred_region
    _
  $region13: #{bottleneck_dhp_forward.6} parent=0 // pred_fallthru
    _
  // Predicated region
  $region14: #{bottleneck_dhp_forward.6} parent=0 // pred_check
    _
  $region15: #{bottleneck_dhp_forward.6} parent=0 // pred_check_branch
    %19 = sbr.rel (0) target = $region17
  $region16: #{bottleneck_dhp_forward.6} parent=0 // pred_region
    _
  $region17: #{bottleneck_dhp_forward.6} parent=0 // pred_fallthru
    _
  %v21 = vld [vmem:[%s1] sm:$0xff]
  %v22 = vld [vmem:[%s1 + $0x8] sm:$0xff]
  %v23 = vld [vmem:[%s2] sm:$0xf]
  %25 = vset.pattern.permute.xlu0 0
  %26 = vperm.xlu0 %25, %v23
  %v27 = vpop.permute.xlu0 %26
  %v29 = vunpack.c.l.s4 839922192
  %v30 = vunpack.c.0.s8 %v29
  %v31 = vperm.slane %v27, %v30
  %v33 = vmul.f32 %v21, %v31
  %v34 = vmul.f32 %v22, %v31
  %v35 = vld [vmem:[%s3] sm:$0xf]
  %37 = vset.pattern.permute.xlu0 0
  %38 = vperm.xlu0 %37, %v35
  %v39 = vpop.permute.xlu0 %38
  %v41 = vunpack.c.l.s4 839922192
  %v42 = vunpack.c.0.s8 %v41
  %v43 = vperm.slane %v39, %v42
  %v45 = vadd.f32 %v33, %v43
  %v46 = vadd.f32 %v34, %v43
  %v47 = vmax.f32 %v45, 0.0
  %v48 = vmax.f32 %v46, 0.0
  %v49 = vld [vmem:[%s0] sm:$0xf]
  %v50 = vld [vmem:[%s0 + $0x4] sm:$0xf]
  %53 = vst [vmem:[#allocation1] ss:$2 sm:$0xff] %v47
  %s54 = scalar_lea.vmem [#allocation1], 16
  %55 = vst [vmem:[%s54] ss:$2 sm:$0xff] %v48
  %v56 = vld.sshfl [vmem:[#allocation1] sm:$0xff pattern:$0x75316420]
  %v57 = vld.sshfl [vmem:[#allocation1 + $0x8] sm:$0xff pattern:$0x75316420]
  %v58 = vld.sshfl [vmem:[#allocation1 + $0x10] sm:$0xff pattern:$0x75316420]
  %v59 = vld.sshfl [vmem:[#allocation1 + $0x18] sm:$0xff pattern:$0x75316420]
  %v64 = vpack.c.bf16 %v56, %v56
  %v65 = vpack.c.bf16 %v57, %v57
  %v66 = vpack.c.bf16 %v58, %v58
  %v67 = vpack.c.bf16 %v59, %v59
  %v70 = vunpack.c.l.b16 %v49
  %v71 = vunpack.c.l.b16 %v50
  %v72 = vpack.c.b16 %v71, %v70
  %vm73 = vcmask 31744
  %v75 = vsel %vm73, %v72, 0
  %vm77 = vcmask 1041408
  %v79 = vsel %vm77, %v64, 0
  %v82 = vsel %vm77, %v65, 0
  %v85 = vsel %vm77, %v66, 0
  %v88 = vsel %vm77, %v67, 0
  %90 = vmatpush.bf16.msra.mxu0 0
  %91 = vmatpush.bf16.msra.mxu0 0
  %92 = vmatpush.bf16.msra.mxu0 0
  %93 = vmatpush.bf16.msra.mxu0 0
  %94 = vmatpush.bf16.msra.mxu0 0
  %95 = vmatpush.bf16.msra.mxu0 0
  %96 = vmatpush.bf16.msra.mxu0 0
  %97 = vmatpush.bf16.msra.mxu0 %v79
  %98 = vmatmul.bf16.gmra.mxu0 %v75
  %v99 = vpop.f32.mrf.mxu0
  %v100 = vadd.f32 0.0, %v99
  %v101 = vpop.f32.mrf.mxu0
  %v102 = vadd.f32 0.0, %v101
  %103 = vdwg.mxu0
  %104 = vmatpush.bf16.msra.mxu0 0
  %105 = vmatpush.bf16.msra.mxu0 0
  %106 = vmatpush.bf16.msra.mxu0 0
  %107 = vmatpush.bf16.msra.mxu0 0
  %108 = vmatpush.bf16.msra.mxu0 0
  %109 = vmatpush.bf16.msra.mxu0 0
  %110 = vmatpush.bf16.msra.mxu0 0
  %111 = vmatpush.bf16.msra.mxu0 %v82
  %112 = vmatmul.bf16.gmra.mxu0 %v75
  %v113 = vpop.f32.mrf.mxu0
  %v114 = vadd.f32 0.0, %v113
  %v115 = vpop.f32.mrf.mxu0
  %v116 = vadd.f32 0.0, %v115
  %117 = vdwg.mxu0
  %118 = vmatpush.bf16.msra.mxu0 0
  %119 = vmatpush.bf16.msra.mxu0 0
  %120 = vmatpush.bf16.msra.mxu0 0
  %121 = vmatpush.bf16.msra.mxu0 0
  %122 = vmatpush.bf16.msra.mxu0 0
  %123 = vmatpush.bf16.msra.mxu0 0
  %124 = vmatpush.bf16.msra.mxu0 0
  %125 = vmatpush.bf16.msra.mxu0 %v85
  %126 = vmatmul.bf16.gmra.mxu0 %v75
  %v127 = vpop.f32.mrf.mxu0
  %v128 = vadd.f32 0.0, %v127
  %v129 = vpop.f32.mrf.mxu0
  %v130 = vadd.f32 0.0, %v129
  %131 = vdwg.mxu0
  %132 = vmatpush.bf16.msra.mxu0 0
  %133 = vmatpush.bf16.msra.mxu0 0
  %134 = vmatpush.bf16.msra.mxu0 0
  %135 = vmatpush.bf16.msra.mxu0 0
  %136 = vmatpush.bf16.msra.mxu0 0
  %137 = vmatpush.bf16.msra.mxu0 0
  %138 = vmatpush.bf16.msra.mxu0 0
  %139 = vmatpush.bf16.msra.mxu0 %v88
  %140 = vmatmul.bf16.gmra.mxu0 %v75
  %v141 = vpop.f32.mrf.mxu0
  %v142 = vadd.f32 0.0, %v141
  %v143 = vpop.f32.mrf.mxu0
  %v144 = vadd.f32 0.0, %v143
  %145 = vdwg.mxu0
  %146 = vst [vmem:[%s4] sm:$0xff] %v100
  %147 = vst [vmem:[%s4 + $0x8] sm:$0xff] %v114
  %148 = vst [vmem:[%s4 + $0x10] sm:$0xff] %v128
  %149 = vst [vmem:[%s4 + $0x18] sm:$0xff] %v142
  %150 = vst [vmem:[%s4 + $0x20] sm:$0xff] %v102
  %151 = vst [vmem:[%s4 + $0x28] sm:$0xff] %v116
  %152 = vst [vmem:[%s4 + $0x30] sm:$0xff] %v130
  %153 = vst [vmem:[%s4 + $0x38] sm:$0xff] %v144
  %v154 = vadd.f32 %v100, %v114
  %v155 = vadd.f32 %v154, %v128
  %v156 = vadd.f32 %v155, %v142
  %157 = vadd.xlane.f32.xlu0 %v156
  %v158 = vpop.xlane.xlu0 %157
  %v159 = vadd.f32 %v102, %v116
  %v160 = vadd.f32 %v159, %v130
  %v161 = vadd.f32 %v160, %v144
  %162 = vadd.xlane.f32.xlu0 %v161
  %v163 = vpop.xlane.xlu0 %162
  %vm164 = vcmask 7168
  %165 = vst.msk [vmem:[%s5] sm:$0xff] %vm164, %v158
  %166 = vst.msk [vmem:[%s5 + $0x8] sm:$0xff] %vm164, %v163
  %v167 = vmul.f32 %v100, %v100
  %v168 = vmul.f32 %v114, %v114
  %v169 = vmul.f32 %v128, %v128
  %v170 = vmul.f32 %v142, %v142
  %v171 = vmul.f32 %v102, %v102
  %v172 = vmul.f32 %v116, %v116
  %v173 = vmul.f32 %v130, %v130
  %v174 = vmul.f32 %v144, %v144
  %v175 = vadd.f32 %v167, %v168
  %v176 = vadd.f32 %v175, %v169
  %v177 = vadd.f32 %v176, %v170
  %178 = vadd.xlane.f32.xlu0 %v177
  %v179 = vpop.xlane.xlu0 %178
  %v180 = vadd.f32 %v171, %v172
  %v181 = vadd.f32 %v180, %v173
  %v182 = vadd.f32 %v181, %v174
  %183 = vadd.xlane.f32.xlu0 %v182
  %v184 = vpop.xlane.xlu0 %183
  %185 = vst.msk [vmem:[%s6] sm:$0xff] %vm164, %v179
  %186 = vst.msk [vmem:[%s6 + $0x8] sm:$0xff] %vm164, %v184
  // Predicated region
  $region18: #{bottleneck_dhp_forward.6} parent=0 // pred_check
    _
  $region19: #{bottleneck_dhp_forward.6} parent=0 // pred_check_branch
    %188 = sbr.rel (0) target = $region21
  $region20: #{bottleneck_dhp_forward.6} parent=0 // pred_region
    _
  $region21: #{bottleneck_dhp_forward.6} parent=0 // pred_fallthru
    _
  // Predicated region
  $region22: #{bottleneck_dhp_forward.6} parent=0 // pred_check
    _
  $region23: #{bottleneck_dhp_forward.6} parent=0 // pred_check_branch
    %190 = sbr.rel (0) target = $region25
  $region24: #{bottleneck_dhp_forward.6} parent=0 // pred_region
    _
  $region25: #{bottleneck_dhp_forward.6} parent=0 // pred_fallthru
    _
  // Predicated region
  $region26: #{bottleneck_dhp_forward.6} parent=0 // pred_check
    _
  $region27: #{bottleneck_dhp_forward.6} parent=0 // pred_check_branch
    %192 = sbr.rel (0) target = $region29
  $region28: #{bottleneck_dhp_forward.6} parent=0 // pred_region
    _
  $region29: #{bottleneck_dhp_forward.6} parent=0 // pred_fallthru
    _
  // Predicated region
  $region30: #{bottleneck_dhp_forward.6} parent=0 // pred_check
    _
  $region31: #{bottleneck_dhp_forward.6} parent=0 // pred_check_branch
    %194 = sbr.rel (0) target = $region33
  $region32: #{bottleneck_dhp_forward.6} parent=0 // pred_region
    _
  $region33: #{bottleneck_dhp_forward.6} parent=0 // pred_fallthru
    _
  // Predicated region
  $region34: #{bottleneck_dhp_forward.6} parent=0 // pred_check
    _
  $region35: #{bottleneck_dhp_forward.6} parent=0 // pred_check_branch
    %196 = sbr.rel (0) target = $region37
  $region36: #{bottleneck_dhp_forward.6} parent=0 // pred_region
    _
  $region37: #{bottleneck_dhp_forward.6} parent=0 // pred_fallthru
    _
  // Predicated region
  $region38: #{bottleneck_dhp_forward.6} parent=0 // pred_check
    _
  $region39: #{bottleneck_dhp_forward.6} parent=0 // pred_check_branch
    %198 = sbr.rel (0) target = $region41
  $region40: #{bottleneck_dhp_forward.6} parent=0 // pred_region
    _
  $region41: #{bottleneck_dhp_forward.6} parent=0 // pred_fallthru
    _

// kernel: bottleneck_dhp_forward.7
$region0: #{bottleneck_dhp_forward.7}
  #allocation0 [shape = 'u32[]', space=smem, size = 0x4, offset = 0x4, fixed_abs, tag = 'smem constant byte address 0x4 - core index']
  #allocation1 [shape = 'u32[72,128]{1,0:T(1,128)}', space=vmem, size = 0x9000, scoped, tag = 'internal scratch']
  %s0 = inlined_call_operand.vmem [shape: f32[16,512], index: 0, kind: input, shape index: {}]
  %s1 = inlined_call_operand.vmem [shape: f32[16,1], index: 1, kind: input, shape index: {}]
  %s2 = inlined_call_operand.vmem [shape: f32[16,1], index: 2, kind: input, shape index: {}]
  %s3 = inlined_call_operand.vmem [shape: f32[16,512], index: 3, kind: input, shape index: {}]
  %s4 = inlined_call_operand.vmem [shape: f32[16,512], index: 4, kind: output, shape index: {}]
  %s5 = sld [smem:[#allocation0]]
  $region26: #{bottleneck_dhp_forward.7} parent=0
    _
  %s7 = ssub.s32 1, %s5
  %s8 = scalar_select 0, %s7, %s5
  // Predicated region
  $region2: #{bottleneck_dhp_forward.7} parent=0 // pred_check
    _
  $region3: #{bottleneck_dhp_forward.7} parent=0 // pred_check_branch
    %10 = sbr.rel (0) target = $region5
  $region4: #{bottleneck_dhp_forward.7} parent=0 // pred_region
    _
  $region5: #{bottleneck_dhp_forward.7} parent=0 // pred_fallthru
    _
  // Predicated region
  $region6: #{bottleneck_dhp_forward.7} parent=0 // pred_check
    _
  $region7: #{bottleneck_dhp_forward.7} parent=0 // pred_check_branch
    %12 = sbr.rel (0) target = $region9
  $region8: #{bottleneck_dhp_forward.7} parent=0 // pred_region
    _
  $region9: #{bottleneck_dhp_forward.7} parent=0 // pred_fallthru
    _
  // Predicated region
  $region10: #{bottleneck_dhp_forward.7} parent=0 // pred_check
    _
  $region11: #{bottleneck_dhp_forward.7} parent=0 // pred_check_branch
    %14 = sbr.rel (0) target = $region13
  $region12: #{bottleneck_dhp_forward.7} parent=0 // pred_region
    _
  $region13: #{bottleneck_dhp_forward.7} parent=0 // pred_fallthru
    _
  // Predicated region
  $region14: #{bottleneck_dhp_forward.7} parent=0 // pred_check
    _
  $region15: #{bottleneck_dhp_forward.7} parent=0 // pred_check_branch
    %16 = sbr.rel (0) target = $region17
  $region16: #{bottleneck_dhp_forward.7} parent=0 // pred_region
    _
  $region17: #{bottleneck_dhp_forward.7} parent=0 // pred_fallthru
    _
  %v17 = vld [vmem:[%s0] sm:$0xff]
  %v18 = vld [vmem:[%s0 + $0x8] sm:$0xff]
  %v19 = vld [vmem:[%s0 + $0x10] sm:$0xff]
  %v20 = vld [vmem:[%s0 + $0x18] sm:$0xff]
  %v21 = vld [vmem:[%s0 + $0x20] sm:$0xff]
  %v22 = vld [vmem:[%s0 + $0x28] sm:$0xff]
  %v23 = vld [vmem:[%s0 + $0x30] sm:$0xff]
  %v24 = vld [vmem:[%s0 + $0x38] sm:$0xff]
  %v25 = vld [vmem:[%s1] sm:$0xff]
  %v26 = vld [vmem:[%s1 + $0x8] sm:$0xff]
  %28 = vset.pattern.permute.xlu0 0
  %29 = vperm.xlu0 %28, %v25
  %v30 = vpop.permute.xlu0 %29
  %33 = vset.pattern.permute.xlu0 0
  %34 = vperm.xlu0 %33, %v26
  %v35 = vpop.permute.xlu0 %34
  %v37 = vmul.f32 %v17, %v30
  %v38 = vmul.f32 %v18, %v30
  %v39 = vmul.f32 %v19, %v30
  %v40 = vmul.f32 %v20, %v30
  %v41 = vmul.f32 %v21, %v35
  %v42 = vmul.f32 %v22, %v35
  %v43 = vmul.f32 %v23, %v35
  %v44 = vmul.f32 %v24, %v35
  %v45 = vld [vmem:[%s2] sm:$0xff]
  %v46 = vld [vmem:[%s2 + $0x8] sm:$0xff]
  %48 = vset.pattern.permute.xlu0 0
  %49 = vperm.xlu0 %48, %v45
  %v50 = vpop.permute.xlu0 %49
  %53 = vset.pattern.permute.xlu0 0
  %54 = vperm.xlu0 %53, %v46
  %v55 = vpop.permute.xlu0 %54
  %v57 = vadd.f32 %v37, %v50
  %v58 = vadd.f32 %v38, %v50
  %v59 = vadd.f32 %v39, %v50
  %v60 = vadd.f32 %v40, %v50
  %v61 = vadd.f32 %v41, %v55
  %v62 = vadd.f32 %v42, %v55
  %v63 = vadd.f32 %v43, %v55
  %v64 = vadd.f32 %v44, %v55
  %v65 = vld [vmem:[%s3] sm:$0xff]
  %v66 = vld [vmem:[%s3 + $0x8] sm:$0xff]
  %v67 = vld [vmem:[%s3 + $0x10] sm:$0xff]
  %v68 = vld [vmem:[%s3 + $0x18] sm:$0xff]
  %v69 = vld [vmem:[%s3 + $0x20] sm:$0xff]
  %v70 = vld [vmem:[%s3 + $0x28] sm:$0xff]
  %v71 = vld [vmem:[%s3 + $0x30] sm:$0xff]
  %v72 = vld [vmem:[%s3 + $0x38] sm:$0xff]
  %v73 = vadd.f32 %v57, %v65
  %v74 = vadd.f32 %v58, %v66
  %v75 = vadd.f32 %v59, %v67
  %v76 = vadd.f32 %v60, %v68
  %v77 = vadd.f32 %v61, %v69
  %v78 = vadd.f32 %v62, %v70
  %v79 = vadd.f32 %v63, %v71
  %v80 = vadd.f32 %v64, %v72
  %v81 = vmax.f32 %v73, 0.0
  %v82 = vmax.f32 %v74, 0.0
  %v83 = vmax.f32 %v75, 0.0
  %v84 = vmax.f32 %v76, 0.0
  %v85 = vmax.f32 %v77, 0.0
  %v86 = vmax.f32 %v78, 0.0
  %v87 = vmax.f32 %v79, 0.0
  %v88 = vmax.f32 %v80, 0.0
  %89 = vst [vmem:[%s4] sm:$0xff] %v81
  %90 = vst [vmem:[%s4 + $0x8] sm:$0xff] %v82
  %91 = vst [vmem:[%s4 + $0x10] sm:$0xff] %v83
  %92 = vst [vmem:[%s4 + $0x18] sm:$0xff] %v84
  %93 = vst [vmem:[%s4 + $0x20] sm:$0xff] %v85
  %94 = vst [vmem:[%s4 + $0x28] sm:$0xff] %v86
  %95 = vst [vmem:[%s4 + $0x30] sm:$0xff] %v87
  %96 = vst [vmem:[%s4 + $0x38] sm:$0xff] %v88
  // Predicated region
  $region18: #{bottleneck_dhp_forward.7} parent=0 // pred_check
    _
  $region19: #{bottleneck_dhp_forward.7} parent=0 // pred_check_branch
    %98 = sbr.rel (0) target = $region21
  $region20: #{bottleneck_dhp_forward.7} parent=0 // pred_region
    _
  $region21: #{bottleneck_dhp_forward.7} parent=0 // pred_fallthru
    _
  // Predicated region
  $region22: #{bottleneck_dhp_forward.7} parent=0 // pred_check
    _
  $region23: #{bottleneck_dhp_forward.7} parent=0 // pred_check_branch
    %100 = sbr.rel (0) target = $region25
  $region24: #{bottleneck_dhp_forward.7} parent=0 // pred_region
    _
  $region25: #{bottleneck_dhp_forward.7} parent=0 // pred_fallthru
    _

</llo_original>
